<compile_context>
chip_gen: v7x
topology: tpu7x:2x2x1
jax: 0.10.0
libtpu: 0.0.40
codegen_flags: <defaults>
</compile_context>

<pallas_src>
import jax
import jax.numpy as jnp
from jax.experimental import pallas as pl
from jax.experimental.pallas import tpu as pltpu

FEAT_IN = 5    # fc1 in_features
HID = 7        # fc1/fc2 out_features
FEAT_OUT = 4   # fc3 out_features
PAD = 8        # padded feature width (one sublane group)


def mlp_kernel(p_ref, x_ref, o_ref):
    # p_ref: (3, PAD, PAD+1) packed params, VMEM-resident across all grid steps
    # x_ref: (PAD, TB)  feature-major batch tile (features on sublanes,
    #                    batch on lanes)
    # o_ref: (FEAT_OUT, TB)
    p = p_ref[...]
    x = x_ref[...]

    w1, b1 = p[0, :, :PAD], p[0, :, PAD:PAD + 1]
    w2, b2 = p[1, :, :PAD], p[1, :, PAD:PAD + 1]
    w3, b3 = p[2, :, :PAD], p[2, :, PAD:PAD + 1]

    h1 = jnp.maximum(jnp.dot(w1, x, preferred_element_type=jnp.float32) + b1, 0.0)
    h2 = jnp.maximum(jnp.dot(w2, h1, preferred_element_type=jnp.float32) + b2, 0.0)
    h3 = jnp.dot(w3, h2, preferred_element_type=jnp.float32) + b3

    o_ref[...] = h3[:FEAT_OUT, :].astype(o_ref.dtype)


def pack_params(params):
    """Pack PyTorch-layout params (W: (out,in), b: (out,)) into one padded
    (3, 8, 9) f32 slab: [:, :, :8] = zero-padded weight, [:, :, 8] = bias."""
    slab = jnp.zeros((3, PAD, PAD + 1), jnp.float32)
    slab = slab.at[0, :HID, :FEAT_IN].set(params["w1"].astype(jnp.float32))
    slab = slab.at[0, :HID, PAD].set(params["b1"].astype(jnp.float32))
    slab = slab.at[1, :HID, :HID].set(params["w2"].astype(jnp.float32))
    slab = slab.at[1, :HID, PAD].set(params["b2"].astype(jnp.float32))
    slab = slab.at[2, :FEAT_OUT, :HID].set(params["w3"].astype(jnp.float32))
    slab = slab.at[2, :FEAT_OUT, PAD].set(params["b3"].astype(jnp.float32))
    return slab


def mlp_forward(x, params, *, tb=512):
    """x: (B, 5) float32. params: dict of PyTorch-layout tensors
    (w: (out, in), b: (out,)). Returns (B, 4)."""
    assert tb % 128 == 0, "batch tile must be a multiple of 128 lanes"
    B = x.shape[0]
    nb = pl.cdiv(B, tb)
    Bp = nb * tb

    # Feature-major + zero-pad: features (5 -> 8 sublanes), batch (B -> Bp lanes).
    xt = jnp.zeros((PAD, Bp), jnp.float32)
    xt = xt.at[:FEAT_IN, :B].set(x.T.astype(jnp.float32))
    slab = pack_params(params)

    out_t = pl.pallas_call(
        mlp_kernel,
        out_shape=jax.ShapeDtypeStruct((FEAT_OUT, Bp), x.dtype),
        grid_spec=pltpu.PrefetchScalarGridSpec(
            num_scalar_prefetch=0,
            grid=(nb,),
            in_specs=[
                # Packed params: constant block index -> single DMA, stays resident.
                pl.BlockSpec((3, PAD, PAD + 1), lambda i: (0, 0, 0)),
                # Activations: tiled over the (lane) batch axis.
                pl.BlockSpec((PAD, tb), lambda i: (0, i)),
            ],
            out_specs=pl.BlockSpec((FEAT_OUT, tb), lambda i: (0, i)),
        ),
        compiler_params=pltpu.CompilerParams(
            # Batch axis is independent: shard across TensorCores on v7x.
            dimension_semantics=("parallel",),
        ),
    )(slab, xt)

    return out_t[:, :B].T  # back to (B, 4), PyTorch convention


def init_params(key):
    """Deterministic init matching PyTorch nn.Linear's default
    U(-1/sqrt(fan_in), 1/sqrt(fan_in)). Weights stored PyTorch-style (out, in)."""
    def linear(key, fan_in, fan_out):
        kw, kb = jax.random.split(key)
        bound = 1.0 / jnp.sqrt(fan_in)
        w = jax.random.uniform(kw, (fan_out, fan_in), jnp.float32, -bound, bound)
        b = jax.random.uniform(kb, (fan_out,), jnp.float32, -bound, bound)
        return w, b

    k1, k2, k3 = jax.random.split(key, 3)
    w1, b1 = linear(k1, FEAT_IN, HID)
    w2, b2 = linear(k2, HID, HID)
    w3, b3 = linear(k3, HID, FEAT_OUT)
    return {"w1": w1, "b1": b1, "w2": w2, "b2": b2, "w3": w3, "b3": b3}


if __name__ == "__main__":
    key = jax.random.PRNGKey(0)
    kp, kx = jax.random.split(key)

    params = init_params(kp)
    x = jax.random.normal(kx, (8, 5), dtype=jnp.float32)  # batch=8, in_features=5

    out = mlp_forward(x, params)
    out = jax.block_until_ready(out)

    # Pure-JAX reference of the same forward pass (nn.Linear: y = x @ W.T + b).
    ref = jnp.maximum(x @ params["w1"].T + params["b1"], 0.0)
    ref = jnp.maximum(ref @ params["w2"].T + params["b2"], 0.0)
    ref = ref @ params["w3"].T + params["b3"]

    assert out.shape == (8, 4)
    assert jnp.allclose(out, ref, atol=1e-5, rtol=1e-5), (
        f"max abs err {jnp.max(jnp.abs(out - ref))}")

    print("KERNEL_OK")
</pallas_src>

<mosaic_0001>
module attributes {stable_mosaic.version = 11 : i64} {
  func.func @mlp_kernel(%arg0: i32, %arg1: memref<3x8x9xf32, #tpu.memory_space<vmem>>, %arg2: memref<8x512xf32, #tpu.memory_space<vmem>>, %arg3: memref<4x512xf32, #tpu.memory_space<vmem>>) attributes {dimension_semantics = [#tpu.dimension_semantics<parallel>], iteration_bounds = array<i64: 1>, scalar_prefetch = 0 : i64, scratch_operands = 0 : i64, tpu.core_type = #tpu.core_type<tc>, window_params = [{pipeline_mode = #tpu.pipeline_mode<synchronous>, transform_indices = @transform_0, window_bounds = array<i64: 3, 8, 9>}, {transform_indices = @transform_1, window_bounds = array<i64: 8, 512>}, {transform_indices = @transform_2, window_bounds = array<i64: 4, 512>}]} {
    %c0 = arith.constant 0 : index
    %c0_0 = arith.constant 0 : index
    %c0_1 = arith.constant 0 : index
    %0 = vector.load %arg1[%c0, %c0_0, %c0_1] : memref<3x8x9xf32, #tpu.memory_space<vmem>>, vector<3x8x9xf32>
    %c0_2 = arith.constant 0 : index
    %c0_3 = arith.constant 0 : index
    %1 = vector.load %arg2[%c0_2, %c0_3] : memref<8x512xf32, #tpu.memory_space<vmem>>, vector<8x512xf32>
    %2 = vector.extract_strided_slice %0 {offsets = [0, 0, 0], sizes = [1, 8, 8], strides = [1, 1, 1]} : vector<3x8x9xf32> to vector<1x8x8xf32>
    %3 = vector.shape_cast %2 : vector<1x8x8xf32> to vector<8x8xf32>
    %4 = vector.extract_strided_slice %0 {offsets = [0, 0, 8], sizes = [1, 8, 1], strides = [1, 1, 1]} : vector<3x8x9xf32> to vector<1x8x1xf32>
    %5 = vector.shape_cast %4 : vector<1x8x1xf32> to vector<8x1xf32>
    %6 = vector.extract_strided_slice %0 {offsets = [1, 0, 0], sizes = [1, 8, 8], strides = [1, 1, 1]} : vector<3x8x9xf32> to vector<1x8x8xf32>
    %7 = vector.shape_cast %6 : vector<1x8x8xf32> to vector<8x8xf32>
    %8 = vector.extract_strided_slice %0 {offsets = [1, 0, 8], sizes = [1, 8, 1], strides = [1, 1, 1]} : vector<3x8x9xf32> to vector<1x8x1xf32>
    %9 = vector.shape_cast %8 : vector<1x8x1xf32> to vector<8x1xf32>
    %10 = vector.extract_strided_slice %0 {offsets = [2, 0, 0], sizes = [1, 8, 8], strides = [1, 1, 1]} : vector<3x8x9xf32> to vector<1x8x8xf32>
    %11 = vector.shape_cast %10 : vector<1x8x8xf32> to vector<8x8xf32>
    %12 = vector.extract_strided_slice %0 {offsets = [2, 0, 8], sizes = [1, 8, 1], strides = [1, 1, 1]} : vector<3x8x9xf32> to vector<1x8x1xf32>
    %13 = vector.shape_cast %12 : vector<1x8x1xf32> to vector<8x1xf32>
    %cst = arith.constant dense<0.000000e+00> : vector<8x512xf32>
    %14 = tpu.matmul %3, %1, %cst {dimension_numbers = #tpu.dot_dimension_numbers<[1], [0], [0], [1], [0, 0, 1, 1], [], []>} : vector<8x8xf32>, vector<8x512xf32>, vector<8x512xf32> -> vector<8x512xf32>
    %15 = vector.broadcast %5 : vector<8x1xf32> to vector<8x512xf32>
    %16 = arith.addf %14, %15 : vector<8x512xf32>
    %cst_4 = arith.constant 0.000000e+00 : f32
    %17 = vector.broadcast %cst_4 : f32 to vector<8x512xf32>
    %18 = arith.maximumf %16, %17 : vector<8x512xf32>
    %cst_5 = arith.constant dense<0.000000e+00> : vector<8x512xf32>
    %19 = tpu.matmul %7, %18, %cst_5 {dimension_numbers = #tpu.dot_dimension_numbers<[1], [0], [0], [1], [0, 0, 1, 1], [], []>} : vector<8x8xf32>, vector<8x512xf32>, vector<8x512xf32> -> vector<8x512xf32>
    %20 = vector.broadcast %9 : vector<8x1xf32> to vector<8x512xf32>
    %21 = arith.addf %19, %20 : vector<8x512xf32>
    %cst_6 = arith.constant 0.000000e+00 : f32
    %22 = vector.broadcast %cst_6 : f32 to vector<8x512xf32>
    %23 = arith.maximumf %21, %22 : vector<8x512xf32>
    %cst_7 = arith.constant dense<0.000000e+00> : vector<8x512xf32>
    %24 = tpu.matmul %11, %23, %cst_7 {dimension_numbers = #tpu.dot_dimension_numbers<[1], [0], [0], [1], [0, 0, 1, 1], [], []>} : vector<8x8xf32>, vector<8x512xf32>, vector<8x512xf32> -> vector<8x512xf32>
    %25 = vector.broadcast %13 : vector<8x1xf32> to vector<8x512xf32>
    %26 = arith.addf %24, %25 : vector<8x512xf32>
    %27 = vector.extract_strided_slice %26 {offsets = [0, 0], sizes = [4, 512], strides = [1, 1]} : vector<8x512xf32> to vector<4x512xf32>
    %c0_8 = arith.constant 0 : index
    %c0_9 = arith.constant 0 : index
    %28 = vector.load %arg3[%c0_8, %c0_9] : memref<4x512xf32, #tpu.memory_space<vmem>>, vector<4x512xf32>
    tpu.vector_store %arg3[%c0_8, %c0_9], %27 {strides = array<i32>} : memref<4x512xf32, #tpu.memory_space<vmem>>, vector<4x512xf32>,
    return
  }
  func.func @transform_0(%arg0: i32) -> (i32, i32, i32) {
    %c0_i32 = arith.constant 0 : i32
    %c0_i32_0 = arith.constant 0 : i32
    %c0_i32_1 = arith.constant 0 : i32
    %c0_i32_2 = arith.constant 0 : i32
    return %c0_i32, %c0_i32_0, %c0_i32_1 : i32, i32, i32
  }
  func.func @transform_1(%arg0: i32) -> (i32, i32) {
    %c0_i32 = arith.constant 0 : i32
    %c0_i32_0 = arith.constant 0 : i32
    return %c0_i32, %arg0 : i32, i32
  }
  func.func @transform_2(%arg0: i32) -> (i32, i32) {
    %c0_i32 = arith.constant 0 : i32
    %c0_i32_0 = arith.constant 0 : i32
    return %c0_i32, %arg0 : i32, i32
  }
}

</mosaic_0001>

<llo_original>
// kernel: tpu_custom_call.1
$region0: #{tpu_custom_call.1}
  #allocation0 [shape = 'u32[]', space=smem, size = 0x4, offset = 0x4, fixed_abs, tag = 'smem constant byte address 0x4 - core index']
  #allocation1 [shape = 'u32[144,128]{1,0:T(1,128)}', space=vmem, size = 0x12000, scoped, tag = 'internal scratch']
  %s0 = inlined_call_operand.hbm [shape: f32[3,8,9], index: 0, kind: input, shape index: {}]
  %s1 = inlined_call_operand.hbm [shape: f32[8,512], index: 1, kind: input, shape index: {}]
  %s2 = inlined_call_operand.hbm [shape: f32[4,512], index: 2, kind: output, shape index: {}]
  %s3 = sld [smem:[#allocation0]]
  $region26: #{tpu_custom_call.1} parent=0
    _
  %s5 = ssub.s32 1, %s3
  %s6 = scalar_select 0, %s5, %s3
  $region1: #{tpu_custom_call.1} parent=0
    #allocation2 [shape = 'u8[12288]{0}', space=vmem, size = 0x3000, scoped, tag = 'input window, operand 0, single buffered']
    #allocation3 [shape = 's32[1]{0}', space=sflag, size = 0x4, scoped, tag = 'scoped memory for tpu_custom_call.1']
    #allocation4 [shape = 's32[1]{0}', space=sflag, size = 0x4, scoped, tag = 'scoped memory for tpu_custom_call.1']
    #allocation5 [shape = 'u8[16384]{0}', space=vmem, size = 0x4000, scoped, tag = 'input window, operand 1, single buffered']
    #allocation6 [shape = 's32[1]{0}', space=sflag, size = 0x4, scoped, tag = 'scoped memory for tpu_custom_call.1']
    #allocation7 [shape = 'u8[8192]{0}', space=vmem, size = 0x2000, scoped, tag = 'output window, operand 0, single buffered']
    %7 = vsyncpa [#allocation3], 0
    %8 = vsyncpa [#allocation6], 0
    %9 = vsyncpa [#allocation4], 0
    // Predicated region
    $region2: #{tpu_custom_call.1} parent=1 // pred_check
      _
    $region3: #{tpu_custom_call.1} parent=1 // pred_check_branch
      %11 = sbr.rel (0) target = $region5
    $region4: #{tpu_custom_call.1} parent=1 // pred_region
      %s13 = ssub.s32 384, 384
      %14 = vsyncadd [#allocation3], %s13
      %s15 = sshll.u32 [#allocation2], 4
      %s16 = int_to_ptr.vmem [resolvable:$true] %s15
      %21 = dma.hbm_to_vmem [thread:$0]  %s0, 384, %s16, [#allocation3], 128, 128, 8
    $region5: #{tpu_custom_call.1} parent=1 // pred_fallthru
      _
    // Predicated region
    $region6: #{tpu_custom_call.1} parent=1 // pred_check
      _
    $region7: #{tpu_custom_call.1} parent=1 // pred_check_branch
      %23 = sbr.rel (0) target = $region9
    $region8: #{tpu_custom_call.1} parent=1 // pred_region
      %s25 = ssub.s32 512, 512
      %26 = vsyncadd [#allocation6], %s25
      %s28 = sshll.u32 [#allocation5], 4
      %s29 = int_to_ptr.vmem [resolvable:$true] %s28
      %31 = dma.hbm_to_vmem [thread:$0]  %s1, 512, %s29, [#allocation6]
    $region9: #{tpu_custom_call.1} parent=1 // pred_fallthru
      _
    // Predicated region
    $region10: #{tpu_custom_call.1} parent=1 // pred_check
      _
    $region11: #{tpu_custom_call.1} parent=1 // pred_check_branch
      %33 = sbr.rel (0) target = $region13
    $region12: #{tpu_custom_call.1} parent=1 // pred_region
      %34 = dma.done [#allocation3], 384
    $region13: #{tpu_custom_call.1} parent=1 // pred_fallthru
      _
    // Predicated region
    $region14: #{tpu_custom_call.1} parent=1 // pred_check
      _
    $region15: #{tpu_custom_call.1} parent=1 // pred_check_branch
      %36 = sbr.rel (0) target = $region17
    $region16: #{tpu_custom_call.1} parent=1 // pred_region
      %37 = dma.done [#allocation6], 512
    $region17: #{tpu_custom_call.1} parent=1 // pred_fallthru
      _
    %v38 = vld [vmem:[#allocation2] sm:$0xff]
    %v39 = vld [vmem:[#allocation2 + $0x8] sm:$0xff]
    %v40 = vld [vmem:[#allocation2 + $0x10] sm:$0xff]
    %v41 = vld [vmem:[#allocation5] sm:$0xff]
    %v42 = vld [vmem:[#allocation5 + $0x8] sm:$0xff]
    %v43 = vld [vmem:[#allocation5 + $0x10] sm:$0xff]
    %v44 = vld [vmem:[#allocation5 + $0x18] sm:$0xff]
    %46 = vset.pattern.permute.xlu0 8
    %47 = vperm.xlu0 %46, %v38
    %v48 = vpop.permute.xlu0 %47
    %vm50 = vcmask 64512
    %v51 = vsel %vm50, %v38, 0
    %53 = vmatprep.subr.mxu0 %v42
    %54 = vmatpush1.msra.mxu0 %v41
    %55 = vmatprep.subr.mxu0 0.0
    %56 = vmatpush1.msra.mxu0 0.0
    %57 = vmatprep.subr.mxu0 0.0
    %58 = vmatpush1.msra.mxu0 0.0
    %59 = vmatprep.subr.mxu0 0.0
    %60 = vmatpush1.msra.mxu0 0.0
    %61 = vmatprep.subr.mxu0 0.0
    %62 = vmatpush1.msra.mxu0 0.0
    %63 = vmatprep.subr.mxu0 0.0
    %64 = vmatpush1.msra.mxu0 0.0
    %65 = vmatprep.subr.mxu0 0.0
    %66 = vmatpush1.msra.mxu0 0.0
    %67 = vmatprep.subr.mxu0 0.0
    %68 = vmatpush1.msra.mxu0 0.0
    %69 = vmatprep.subr.mxu0 0.0
    %70 = vmatpush1.msra.mxu0 0.0
    %71 = vmatprep.subr.mxu0 0.0
    %72 = vmatpush1.msra.mxu0 0.0
    %73 = vmatprep.subr.mxu0 0.0
    %74 = vmatpush1.msra.mxu0 0.0
    %75 = vmatprep.subr.mxu0 0.0
    %76 = vmatpush1.msra.mxu0 0.0
    %77 = vmatprep.subr.mxu0 0.0
    %78 = vmatpush1.msra.mxu0 0.0
    %79 = vmatprep.subr.mxu0 0.0
    %80 = vmatpush1.msra.mxu0 0.0
    %81 = vmatprep.subr.mxu0 0.0
    %82 = vmatpush1.msra.mxu0 0.0
    %83 = vmatprep.subr.mxu0 0.0
    %84 = vmatpush1.msra.mxu0 0.0
    %85 = vmatprep.subr.mxu0 0.0
    %86 = vmatpush1.msra.mxu0 0.0
    %87 = vmatprep.subr.mxu0 0.0
    %88 = vmatpush1.msra.mxu0 0.0
    %89 = vmatprep.subr.mxu0 0.0
    %90 = vmatpush1.msra.mxu0 0.0
    %91 = vmatprep.subr.mxu0 0.0
    %92 = vmatpush1.msra.mxu0 0.0
    %93 = vmatprep.subr.mxu0 0.0
    %94 = vmatpush1.msra.mxu0 0.0
    %95 = vmatprep.subr.mxu0 0.0
    %96 = vmatpush1.msra.mxu0 0.0
    %97 = vmatprep.subr.mxu0 0.0
    %98 = vmatpush1.msra.mxu0 0.0
    %99 = vmatprep.subr.mxu0 0.0
    %100 = vmatpush1.msra.mxu0 0.0
    %101 = vmatprep.subr.mxu0 0.0
    %102 = vmatpush1.msra.mxu0 0.0
    %103 = vmatprep.subr.mxu0 0.0
    %104 = vmatpush1.msra.mxu0 0.0
    %105 = vmatprep.subr.mxu0 0.0
    %106 = vmatpush1.msra.mxu0 0.0
    %107 = vmatprep.subr.mxu0 0.0
    %108 = vmatpush1.msra.mxu0 0.0
    %109 = vmatprep.subr.mxu0 0.0
    %110 = vmatpush1.msra.mxu0 0.0
    %111 = vmatprep.subr.mxu0 0.0
    %112 = vmatpush1.msra.mxu0 0.0
    %113 = vmatprep.subr.mxu0 0.0
    %114 = vmatpush1.msra.mxu0 0.0
    %115 = vmatprep.subr.mxu0 0.0
    %116 = vmatpush1.msra.mxu0 0.0
    %117 = vmatprep.mubr.f32.mxu0 0.0
    %118 = vmatmul.mubr.f32.gmra.mrb[0].mxu0 %v51
    %v119 = vpop.f32.mrb[0].mxu0
    %v120 = vadd.f32 %v48, %v119
    %v121 = vpop.f32.mrb[0].mxu0
    %v122 = vadd.f32 %v48, %v121
    %123 = vdwg.mxu0
    %124 = vmatprep.subr.mxu0 %v44
    %125 = vmatpush1.msra.mxu0 %v43
    %126 = vmatprep.subr.mxu0 0.0
    %127 = vmatpush1.msra.mxu0 0.0
    %128 = vmatprep.subr.mxu0 0.0
    %129 = vmatpush1.msra.mxu0 0.0
    %130 = vmatprep.subr.mxu0 0.0
    %131 = vmatpush1.msra.mxu0 0.0
    %132 = vmatprep.subr.mxu0 0.0
    %133 = vmatpush1.msra.mxu0 0.0
    %134 = vmatprep.subr.mxu0 0.0
    %135 = vmatpush1.msra.mxu0 0.0
    %136 = vmatprep.subr.mxu0 0.0
    %137 = vmatpush1.msra.mxu0 0.0
    %138 = vmatprep.subr.mxu0 0.0
    %139 = vmatpush1.msra.mxu0 0.0
    %140 = vmatprep.subr.mxu0 0.0
    %141 = vmatpush1.msra.mxu0 0.0
    %142 = vmatprep.subr.mxu0 0.0
    %143 = vmatpush1.msra.mxu0 0.0
    %144 = vmatprep.subr.mxu0 0.0
    %145 = vmatpush1.msra.mxu0 0.0
    %146 = vmatprep.subr.mxu0 0.0
    %147 = vmatpush1.msra.mxu0 0.0
    %148 = vmatprep.subr.mxu0 0.0
    %149 = vmatpush1.msra.mxu0 0.0
    %150 = vmatprep.subr.mxu0 0.0
    %151 = vmatpush1.msra.mxu0 0.0
    %152 = vmatprep.subr.mxu0 0.0
    %153 = vmatpush1.msra.mxu0 0.0
    %154 = vmatprep.subr.mxu0 0.0
    %155 = vmatpush1.msra.mxu0 0.0
    %156 = vmatprep.subr.mxu0 0.0
    %157 = vmatpush1.msra.mxu0 0.0
    %158 = vmatprep.subr.mxu0 0.0
    %159 = vmatpush1.msra.mxu0 0.0
    %160 = vmatprep.subr.mxu0 0.0
    %161 = vmatpush1.msra.mxu0 0.0
    %162 = vmatprep.subr.mxu0 0.0
    %163 = vmatpush1.msra.mxu0 0.0
    %164 = vmatprep.subr.mxu0 0.0
    %165 = vmatpush1.msra.mxu0 0.0
    %166 = vmatprep.subr.mxu0 0.0
    %167 = vmatpush1.msra.mxu0 0.0
    %168 = vmatprep.subr.mxu0 0.0
    %169 = vmatpush1.msra.mxu0 0.0
    %170 = vmatprep.subr.mxu0 0.0
    %171 = vmatpush1.msra.mxu0 0.0
    %172 = vmatprep.subr.mxu0 0.0
    %173 = vmatpush1.msra.mxu0 0.0
    %174 = vmatprep.subr.mxu0 0.0
    %175 = vmatpush1.msra.mxu0 0.0
    %176 = vmatprep.subr.mxu0 0.0
    %177 = vmatpush1.msra.mxu0 0.0
    %178 = vmatprep.subr.mxu0 0.0
    %179 = vmatpush1.msra.mxu0 0.0
    %180 = vmatprep.subr.mxu0 0.0
    %181 = vmatpush1.msra.mxu0 0.0
    %182 = vmatprep.subr.mxu0 0.0
    %183 = vmatpush1.msra.mxu0 0.0
    %184 = vmatprep.subr.mxu0 0.0
    %185 = vmatpush1.msra.mxu0 0.0
    %186 = vmatprep.subr.mxu0 0.0
    %187 = vmatpush1.msra.mxu0 0.0
    %188 = vmatprep.mubr.f32.mxu0 0.0
    %189 = vmatmul.mubr.f32.gmra.mrb[0].mxu0 %v51
    %v190 = vpop.f32.mrb[0].mxu0
    %v191 = vadd.f32 %v48, %v190
    %v192 = vpop.f32.mrb[0].mxu0
    %v193 = vadd.f32 %v48, %v192
    %194 = vdwg.mxu0
    %v195 = vmax.f32 %v120, 0.0
    %v196 = vmax.f32 %v122, 0.0
    %v197 = vmax.f32 %v191, 0.0
    %v198 = vmax.f32 %v193, 0.0
    %200 = vset.pattern.permute.xlu0 8
    %201 = vperm.xlu0 %200, %v39
    %v202 = vpop.permute.xlu0 %201
    %v204 = vsel %vm50, %v39, 0
    %206 = vmatprep.subr.mxu0 %v196
    %207 = vmatpush1.msra.mxu0 %v195
    %208 = vmatprep.subr.mxu0 0.0
    %209 = vmatpush1.msra.mxu0 0.0
    %210 = vmatprep.subr.mxu0 0.0
    %211 = vmatpush1.msra.mxu0 0.0
    %212 = vmatprep.subr.mxu0 0.0
    %213 = vmatpush1.msra.mxu0 0.0
    %214 = vmatprep.subr.mxu0 0.0
    %215 = vmatpush1.msra.mxu0 0.0
    %216 = vmatprep.subr.mxu0 0.0
    %217 = vmatpush1.msra.mxu0 0.0
    %218 = vmatprep.subr.mxu0 0.0
    %219 = vmatpush1.msra.mxu0 0.0
    %220 = vmatprep.subr.mxu0 0.0
    %221 = vmatpush1.msra.mxu0 0.0
    %222 = vmatprep.subr.mxu0 0.0
    %223 = vmatpush1.msra.mxu0 0.0
    %224 = vmatprep.subr.mxu0 0.0
    %225 = vmatpush1.msra.mxu0 0.0
    %226 = vmatprep.subr.mxu0 0.0
    %227 = vmatpush1.msra.mxu0 0.0
    %228 = vmatprep.subr.mxu0 0.0
    %229 = vmatpush1.msra.mxu0 0.0
    %230 = vmatprep.subr.mxu0 0.0
    %231 = vmatpush1.msra.mxu0 0.0
    %232 = vmatprep.subr.mxu0 0.0
    %233 = vmatpush1.msra.mxu0 0.0
    %234 = vmatprep.subr.mxu0 0.0
    %235 = vmatpush1.msra.mxu0 0.0
    %236 = vmatprep.subr.mxu0 0.0
    %237 = vmatpush1.msra.mxu0 0.0
    %238 = vmatprep.subr.mxu0 0.0
    %239 = vmatpush1.msra.mxu0 0.0
    %240 = vmatprep.subr.mxu0 0.0
    %241 = vmatpush1.msra.mxu0 0.0
    %242 = vmatprep.subr.mxu0 0.0
    %243 = vmatpush1.msra.mxu0 0.0
    %244 = vmatprep.subr.mxu0 0.0
    %245 = vmatpush1.msra.mxu0 0.0
    %246 = vmatprep.subr.mxu0 0.0
    %247 = vmatpush1.msra.mxu0 0.0
    %248 = vmatprep.subr.mxu0 0.0
    %249 = vmatpush1.msra.mxu0 0.0
    %250 = vmatprep.subr.mxu0 0.0
    %251 = vmatpush1.msra.mxu0 0.0
    %252 = vmatprep.subr.mxu0 0.0
    %253 = vmatpush1.msra.mxu0 0.0
    %254 = vmatprep.subr.mxu0 0.0
    %255 = vmatpush1.msra.mxu0 0.0
    %256 = vmatprep.subr.mxu0 0.0
    %257 = vmatpush1.msra.mxu0 0.0
    %258 = vmatprep.subr.mxu0 0.0
    %259 = vmatpush1.msra.mxu0 0.0
    %260 = vmatprep.subr.mxu0 0.0
    %261 = vmatpush1.msra.mxu0 0.0
    %262 = vmatprep.subr.mxu0 0.0
    %263 = vmatpush1.msra.mxu0 0.0
    %264 = vmatprep.subr.mxu0 0.0
    %265 = vmatpush1.msra.mxu0 0.0
    %266 = vmatprep.subr.mxu0 0.0
    %267 = vmatpush1.msra.mxu0 0.0
    %268 = vmatprep.subr.mxu0 0.0
    %269 = vmatpush1.msra.mxu0 0.0
    %270 = vmatprep.mubr.f32.mxu0 0.0
    %271 = vmatmul.mubr.f32.gmra.mrb[0].mxu0 %v204
    %v272 = vpop.f32.mrb[0].mxu0
    %v273 = vadd.f32 %v202, %v272
    %v274 = vpop.f32.mrb[0].mxu0
    %v275 = vadd.f32 %v202, %v274
    %276 = vdwg.mxu0
    %277 = vmatprep.subr.mxu0 %v198
    %278 = vmatpush1.msra.mxu0 %v197
    %279 = vmatprep.subr.mxu0 0.0
    %280 = vmatpush1.msra.mxu0 0.0
    %281 = vmatprep.subr.mxu0 0.0
    %282 = vmatpush1.msra.mxu0 0.0
    %283 = vmatprep.subr.mxu0 0.0
    %284 = vmatpush1.msra.mxu0 0.0
    %285 = vmatprep.subr.mxu0 0.0
    %286 = vmatpush1.msra.mxu0 0.0
    %287 = vmatprep.subr.mxu0 0.0
    %288 = vmatpush1.msra.mxu0 0.0
    %289 = vmatprep.subr.mxu0 0.0
    %290 = vmatpush1.msra.mxu0 0.0
    %291 = vmatprep.subr.mxu0 0.0
    %292 = vmatpush1.msra.mxu0 0.0
    %293 = vmatprep.subr.mxu0 0.0
    %294 = vmatpush1.msra.mxu0 0.0
    %295 = vmatprep.subr.mxu0 0.0
    %296 = vmatpush1.msra.mxu0 0.0
    %297 = vmatprep.subr.mxu0 0.0
    %298 = vmatpush1.msra.mxu0 0.0
    %299 = vmatprep.subr.mxu0 0.0
    %300 = vmatpush1.msra.mxu0 0.0
    %301 = vmatprep.subr.mxu0 0.0
    %302 = vmatpush1.msra.mxu0 0.0
    %303 = vmatprep.subr.mxu0 0.0
    %304 = vmatpush1.msra.mxu0 0.0
    %305 = vmatprep.subr.mxu0 0.0
    %306 = vmatpush1.msra.mxu0 0.0
    %307 = vmatprep.subr.mxu0 0.0
    %308 = vmatpush1.msra.mxu0 0.0
    %309 = vmatprep.subr.mxu0 0.0
    %310 = vmatpush1.msra.mxu0 0.0
    %311 = vmatprep.subr.mxu0 0.0
    %312 = vmatpush1.msra.mxu0 0.0
    %313 = vmatprep.subr.mxu0 0.0
    %314 = vmatpush1.msra.mxu0 0.0
    %315 = vmatprep.subr.mxu0 0.0
    %316 = vmatpush1.msra.mxu0 0.0
    %317 = vmatprep.subr.mxu0 0.0
    %318 = vmatpush1.msra.mxu0 0.0
    %319 = vmatprep.subr.mxu0 0.0
    %320 = vmatpush1.msra.mxu0 0.0
    %321 = vmatprep.subr.mxu0 0.0
    %322 = vmatpush1.msra.mxu0 0.0
    %323 = vmatprep.subr.mxu0 0.0
    %324 = vmatpush1.msra.mxu0 0.0
    %325 = vmatprep.subr.mxu0 0.0
    %326 = vmatpush1.msra.mxu0 0.0
    %327 = vmatprep.subr.mxu0 0.0
    %328 = vmatpush1.msra.mxu0 0.0
    %329 = vmatprep.subr.mxu0 0.0
    %330 = vmatpush1.msra.mxu0 0.0
    %331 = vmatprep.subr.mxu0 0.0
    %332 = vmatpush1.msra.mxu0 0.0
    %333 = vmatprep.subr.mxu0 0.0
    %334 = vmatpush1.msra.mxu0 0.0
    %335 = vmatprep.subr.mxu0 0.0
    %336 = vmatpush1.msra.mxu0 0.0
    %337 = vmatprep.subr.mxu0 0.0
    %338 = vmatpush1.msra.mxu0 0.0
    %339 = vmatprep.subr.mxu0 0.0
    %340 = vmatpush1.msra.mxu0 0.0
    %341 = vmatprep.mubr.f32.mxu0 0.0
    %342 = vmatmul.mubr.f32.gmra.mrb[0].mxu0 %v204
    %v343 = vpop.f32.mrb[0].mxu0
    %v344 = vadd.f32 %v202, %v343
    %v345 = vpop.f32.mrb[0].mxu0
    %v346 = vadd.f32 %v202, %v345
    %347 = vdwg.mxu0
    %v348 = vmax.f32 %v273, 0.0
    %v349 = vmax.f32 %v275, 0.0
    %v350 = vmax.f32 %v344, 0.0
    %v351 = vmax.f32 %v346, 0.0
    %353 = vset.pattern.permute.xlu0 8
    %354 = vperm.xlu0 %353, %v40
    %v355 = vpop.permute.xlu0 %354
    %v357 = vsel %vm50, %v40, 0
    %359 = vmatprep.subr.mxu0 %v349
    %360 = vmatpush1.msra.mxu0 %v348
    %361 = vmatprep.subr.mxu0 0.0
    %362 = vmatpush1.msra.mxu0 0.0
    %363 = vmatprep.subr.mxu0 0.0
    %364 = vmatpush1.msra.mxu0 0.0
    %365 = vmatprep.subr.mxu0 0.0
    %366 = vmatpush1.msra.mxu0 0.0
    %367 = vmatprep.subr.mxu0 0.0
    %368 = vmatpush1.msra.mxu0 0.0
    %369 = vmatprep.subr.mxu0 0.0
    %370 = vmatpush1.msra.mxu0 0.0
    %371 = vmatprep.subr.mxu0 0.0
    %372 = vmatpush1.msra.mxu0 0.0
    %373 = vmatprep.subr.mxu0 0.0
    %374 = vmatpush1.msra.mxu0 0.0
    %375 = vmatprep.subr.mxu0 0.0
    %376 = vmatpush1.msra.mxu0 0.0
    %377 = vmatprep.subr.mxu0 0.0
    %378 = vmatpush1.msra.mxu0 0.0
    %379 = vmatprep.subr.mxu0 0.0
    %380 = vmatpush1.msra.mxu0 0.0
    %381 = vmatprep.subr.mxu0 0.0
    %382 = vmatpush1.msra.mxu0 0.0
    %383 = vmatprep.subr.mxu0 0.0
    %384 = vmatpush1.msra.mxu0 0.0
    %385 = vmatprep.subr.mxu0 0.0
    %386 = vmatpush1.msra.mxu0 0.0
    %387 = vmatprep.subr.mxu0 0.0
    %388 = vmatpush1.msra.mxu0 0.0
    %389 = vmatprep.subr.mxu0 0.0
    %390 = vmatpush1.msra.mxu0 0.0
    %391 = vmatprep.subr.mxu0 0.0
    %392 = vmatpush1.msra.mxu0 0.0
    %393 = vmatprep.subr.mxu0 0.0
    %394 = vmatpush1.msra.mxu0 0.0
    %395 = vmatprep.subr.mxu0 0.0
    %396 = vmatpush1.msra.mxu0 0.0
    %397 = vmatprep.subr.mxu0 0.0
    %398 = vmatpush1.msra.mxu0 0.0
    %399 = vmatprep.subr.mxu0 0.0
    %400 = vmatpush1.msra.mxu0 0.0
    %401 = vmatprep.subr.mxu0 0.0
    %402 = vmatpush1.msra.mxu0 0.0
    %403 = vmatprep.subr.mxu0 0.0
    %404 = vmatpush1.msra.mxu0 0.0
    %405 = vmatprep.subr.mxu0 0.0
    %406 = vmatpush1.msra.mxu0 0.0
    %407 = vmatprep.subr.mxu0 0.0
    %408 = vmatpush1.msra.mxu0 0.0
    %409 = vmatprep.subr.mxu0 0.0
    %410 = vmatpush1.msra.mxu0 0.0
    %411 = vmatprep.subr.mxu0 0.0
    %412 = vmatpush1.msra.mxu0 0.0
    %413 = vmatprep.subr.mxu0 0.0
    %414 = vmatpush1.msra.mxu0 0.0
    %415 = vmatprep.subr.mxu0 0.0
    %416 = vmatpush1.msra.mxu0 0.0
    %417 = vmatprep.subr.mxu0 0.0
    %418 = vmatpush1.msra.mxu0 0.0
    %419 = vmatprep.subr.mxu0 0.0
    %420 = vmatpush1.msra.mxu0 0.0
    %421 = vmatprep.subr.mxu0 0.0
    %422 = vmatpush1.msra.mxu0 0.0
    %423 = vmatprep.mubr.f32.mxu0 0.0
    %424 = vmatmul.mubr.f32.gmra.mrb[0].mxu0 %v357
    %v425 = vpop.f32.mrb[0].mxu0
    %v426 = vadd.f32 %v355, %v425
    %v427 = vpop.f32.mrb[0].mxu0
    %v428 = vadd.f32 %v355, %v427
    %429 = vdwg.mxu0
    %430 = vmatprep.subr.mxu0 %v351
    %431 = vmatpush1.msra.mxu0 %v350
    %432 = vmatprep.subr.mxu0 0.0
    %433 = vmatpush1.msra.mxu0 0.0
    %434 = vmatprep.subr.mxu0 0.0
    %435 = vmatpush1.msra.mxu0 0.0
    %436 = vmatprep.subr.mxu0 0.0
    %437 = vmatpush1.msra.mxu0 0.0
    %438 = vmatprep.subr.mxu0 0.0
    %439 = vmatpush1.msra.mxu0 0.0
    %440 = vmatprep.subr.mxu0 0.0
    %441 = vmatpush1.msra.mxu0 0.0
    %442 = vmatprep.subr.mxu0 0.0
    %443 = vmatpush1.msra.mxu0 0.0
    %444 = vmatprep.subr.mxu0 0.0
    %445 = vmatpush1.msra.mxu0 0.0
    %446 = vmatprep.subr.mxu0 0.0
    %447 = vmatpush1.msra.mxu0 0.0
    %448 = vmatprep.subr.mxu0 0.0
    %449 = vmatpush1.msra.mxu0 0.0
    %450 = vmatprep.subr.mxu0 0.0
    %451 = vmatpush1.msra.mxu0 0.0
    %452 = vmatprep.subr.mxu0 0.0
    %453 = vmatpush1.msra.mxu0 0.0
    %454 = vmatprep.subr.mxu0 0.0
    %455 = vmatpush1.msra.mxu0 0.0
    %456 = vmatprep.subr.mxu0 0.0
    %457 = vmatpush1.msra.mxu0 0.0
    %458 = vmatprep.subr.mxu0 0.0
    %459 = vmatpush1.msra.mxu0 0.0
    %460 = vmatprep.subr.mxu0 0.0
    %461 = vmatpush1.msra.mxu0 0.0
    %462 = vmatprep.subr.mxu0 0.0
    %463 = vmatpush1.msra.mxu0 0.0
    %464 = vmatprep.subr.mxu0 0.0
    %465 = vmatpush1.msra.mxu0 0.0
    %466 = vmatprep.subr.mxu0 0.0
    %467 = vmatpush1.msra.mxu0 0.0
    %468 = vmatprep.subr.mxu0 0.0
    %469 = vmatpush1.msra.mxu0 0.0
    %470 = vmatprep.subr.mxu0 0.0
    %471 = vmatpush1.msra.mxu0 0.0
    %472 = vmatprep.subr.mxu0 0.0
    %473 = vmatpush1.msra.mxu0 0.0
    %474 = vmatprep.subr.mxu0 0.0
    %475 = vmatpush1.msra.mxu0 0.0
    %476 = vmatprep.subr.mxu0 0.0
    %477 = vmatpush1.msra.mxu0 0.0
    %478 = vmatprep.subr.mxu0 0.0
    %479 = vmatpush1.msra.mxu0 0.0
    %480 = vmatprep.subr.mxu0 0.0
    %481 = vmatpush1.msra.mxu0 0.0
    %482 = vmatprep.subr.mxu0 0.0
    %483 = vmatpush1.msra.mxu0 0.0
    %484 = vmatprep.subr.mxu0 0.0
    %485 = vmatpush1.msra.mxu0 0.0
    %486 = vmatprep.subr.mxu0 0.0
    %487 = vmatpush1.msra.mxu0 0.0
    %488 = vmatprep.subr.mxu0 0.0
    %489 = vmatpush1.msra.mxu0 0.0
    %490 = vmatprep.subr.mxu0 0.0
    %491 = vmatpush1.msra.mxu0 0.0
    %492 = vmatprep.subr.mxu0 0.0
    %493 = vmatpush1.msra.mxu0 0.0
    %494 = vmatprep.mubr.f32.mxu0 0.0
    %495 = vmatmul.mubr.f32.gmra.mrb[0].mxu0 %v357
    %v496 = vpop.f32.mrb[0].mxu0
    %v497 = vadd.f32 %v355, %v496
    %v498 = vpop.f32.mrb[0].mxu0
    %v499 = vadd.f32 %v355, %v498
    %500 = vdwg.mxu0
    %v505 = vcombine.low %v426, %v428
    %v506 = vcombine.low %v497, %v499
    %509 = vst [vmem:[#allocation7] sm:$0xff] %v505
    %510 = vst [vmem:[#allocation7 + $0x8] sm:$0xff] %v506
    // Predicated region
    $region18: #{tpu_custom_call.1} parent=1 // pred_check
      _
    $region19: #{tpu_custom_call.1} parent=1 // pred_check_branch
      %512 = sbr.rel (0) target = $region21
    $region20: #{tpu_custom_call.1} parent=1 // pred_region
      %s514 = ssub.s32 256, 256
      %515 = vsyncadd [#allocation4], %s514
      %s517 = sshll.u32 [#allocation7], 4
      %s518 = int_to_ptr.vmem [resolvable:$true] %s517
      %520 = dma.vmem_to_hbm [thread:$0]  %s518, 256, %s2, [#allocation4]
    $region21: #{tpu_custom_call.1} parent=1 // pred_fallthru
      _
    // Predicated region
    $region22: #{tpu_custom_call.1} parent=1 // pred_check
      _
    $region23: #{tpu_custom_call.1} parent=1 // pred_check_branch
      %522 = sbr.rel (0) target = $region25
    $region24: #{tpu_custom_call.1} parent=1 // pred_region
      %523 = dma.done [#allocation4], 256
    $region25: #{tpu_custom_call.1} parent=1 // pred_fallthru
      _
    %524 = vsyncpa [#allocation3], 1
    %525 = vsyncpa [#allocation6], 1
    %526 = vsyncpa [#allocation4], 1

</llo_original>
